<compile_context>
chip_gen: v5e
topology: v5e:2x2
jax: 0.10.0
libtpu: 0.0.40
codegen_flags: <defaults>
</compile_context>

<pallas_src>
import functools

import jax
import jax.numpy as jnp
from jax import lax
from jax.experimental import pallas as pl
from jax.experimental.pallas import tpu as pltpu

_LANES = 128
_MAX_TILE_ROWS = 512          # 512 * 128 * 4 B = 256 KiB per input block
_I32_MAX = 2147483647
_I32_MIN = -2147483648


def _radix_select_kernel(x_ref, key_out_ref, acc_ref, lo_ref, rank_ref, w_ref,
                         *, n, k, tile_rows, needs_mask):
    # x_ref      : VMEM (tile_rows, 128) f32 data tile
    # key_out_ref: VMEM (1, 1) int32 -- selected (k-th smallest) key
    # acc_ref    : VMEM (tile_rows, 128) int32 -- per-position partial counts
    # lo_ref     : VMEM (1, 1) int32 -- lower bound of current key range
    # rank_ref   : VMEM (1, 1) int32 -- remaining rank within current range
    # w_ref      : VMEM (1, 1) int32 -- (half-width - 1) = 2^p - 1 for this bit
    b = pl.program_id(0)              # bit step, MSB -> LSB
    t = pl.program_id(1)              # data tile
    last_bit = pl.num_programs(0) - 1
    last_tile = pl.num_programs(1) - 1

    @pl.when(jnp.logical_and(b == 0, t == 0))
    def _init_state():
        lo_ref[...] = jnp.full((1, 1), _I32_MIN, dtype=jnp.int32)
        rank_ref[...] = jnp.full((1, 1), k, dtype=jnp.int32)
        w_ref[...] = jnp.full((1, 1), _I32_MAX, dtype=jnp.int32)

    @pl.when(t == 0)
    def _reset_counts():
        acc_ref[...] = jnp.zeros_like(acc_ref)

    # Order-preserving int32 key: key = bits (if >= 0) else bits ^ 0x7FFFFFFF.
    bits = pltpu.bitcast(x_ref[...], jnp.int32)
    key = jnp.where(bits >= 0, bits, bits ^ jnp.int32(_I32_MAX))

    lo = lo_ref[...]                  # (1,1), broadcast against the tile
    hi = lo + w_ref[...]              # upper end of the lower half
    in_lower = jnp.logical_and(key >= lo, key <= hi)
    if needs_mask:
        rows = lax.broadcasted_iota(jnp.int32, (tile_rows, _LANES), 0)
        cols = lax.broadcasted_iota(jnp.int32, (tile_rows, _LANES), 1)
        gidx = (t * tile_rows + rows) * _LANES + cols
        in_lower = jnp.logical_and(in_lower, gidx < n)
    acc_ref[...] += in_lower.astype(jnp.int32)     # VALU-only hot path

    @pl.when(t == last_tile)
    def _finish_bit():
        c0 = jnp.sum(acc_ref[...], keepdims=True)  # (1,1): count in lower half
        take_upper = rank_ref[...] >= c0
        lo_ref[...] = jnp.where(take_upper, hi + 1, lo)
        rank_ref[...] = jnp.where(take_upper, rank_ref[...] - c0, rank_ref[...])
        w_ref[...] = w_ref[...] >> 1               # next half-width - 1

        @pl.when(b == last_bit)
        def _emit():
            key_out_ref[...] = lo_ref[...]


def _threshold_kernel(med_ref, x_ref, o_ref):
    # med_ref: SMEM (1,1) f32 median; x_ref/o_ref: VMEM (tile_rows, 128)
    o_ref[...] = (x_ref[...] > med_ref[0, 0]).astype(jnp.float32)


def balanced_binarize(x):
    """(x > median(x)).float() with torch's lower-median semantics."""
    orig_shape = x.shape
    xf = jnp.ravel(x).astype(jnp.float32)
    n = xf.shape[0]
    k = (n - 1) // 2                       # lower-median rank

    # Lane-dense (rows, 128) view; pad only if numel is not a lane multiple.
    rem = (-n) % _LANES
    if rem:
        xf = jnp.concatenate([xf, jnp.zeros((rem,), jnp.float32)])
    rows = (n + rem) // _LANES
    x2 = xf.reshape(rows, _LANES)

    tile_rows = rows if rows <= _MAX_TILE_ROWS else _MAX_TILE_ROWS
    n_tiles = pl.cdiv(rows, tile_rows)
    needs_mask = (rem != 0) or (rows % tile_rows != 0)

    # ---- Phase 1: exact median key via 32-pass radix select -----------------
    key_bits = pl.pallas_call(
        functools.partial(_radix_select_kernel, n=n, k=k,
                          tile_rows=tile_rows, needs_mask=needs_mask),
        out_shape=jax.ShapeDtypeStruct((1, 1), jnp.int32),
        grid=(32, n_tiles),
        in_specs=[pl.BlockSpec((tile_rows, _LANES), lambda b, t: (t, 0))],
        out_specs=pl.BlockSpec((1, 1), lambda b, t: (0, 0)),
        scratch_shapes=[
            pltpu.VMEM((tile_rows, _LANES), jnp.int32),   # partial counts
            pltpu.VMEM((1, 1), jnp.int32),                # lo
            pltpu.VMEM((1, 1), jnp.int32),                # rank remaining
            pltpu.VMEM((1, 1), jnp.int32),                # half-width - 1
        ],
        compiler_params=pltpu.CompilerParams(
            dimension_semantics=("arbitrary", "arbitrary")),
    )(x2)

    # Invert the order-preserving key map and bitcast back to f32 (tiny scalar ops).
    kb = key_bits[0, 0]
    mbits = jnp.where(kb >= 0, kb, kb ^ jnp.int32(_I32_MAX))
    median = lax.bitcast_convert_type(mbits, jnp.float32).reshape(1, 1)

    # ---- Phase 2: gridded, pipelined, lane-dense thresholding ---------------
    out2 = pl.pallas_call(
        _threshold_kernel,
        out_shape=jax.ShapeDtypeStruct((rows, _LANES), jnp.float32),
        grid=(n_tiles,),
        in_specs=[
            pl.BlockSpec(memory_space=pltpu.MemorySpace.SMEM),        # median
            pl.BlockSpec((tile_rows, _LANES), lambda t: (t, 0)),      # data
        ],
        out_specs=pl.BlockSpec((tile_rows, _LANES), lambda t: (t, 0)),
        compiler_params=pltpu.CompilerParams(
            dimension_semantics=("parallel",)),
    )(median, x2)

    out = out2.reshape(-1)
    if rem:
        out = out[:n]
    return out.reshape(orig_shape)


if __name__ == "__main__":
    rng = jax.random.PRNGKey(0)
    x = jax.random.normal(rng, (2, 4, 16, 16), dtype=jnp.float32)   # NCHW

    out = jax.block_until_ready(balanced_binarize(x))

    # Reference: torch.median = lower median of the flattened tensor.
    xf = x.reshape(-1)
    med = jnp.sort(xf)[(xf.shape[0] - 1) // 2]
    expected = (x > med).astype(jnp.float32)
    assert out.shape == x.shape and out.dtype == jnp.float32
    assert bool(jnp.all(out == expected)), "mismatch vs reference (main)"

    # Ragged size (numel % 128 != 0) exercises the in-kernel masking path.
    x_r = jax.random.normal(jax.random.PRNGKey(0), (3, 5, 7), dtype=jnp.float32)
    out_r = jax.block_until_ready(balanced_binarize(x_r))
    xfr = x_r.reshape(-1)
    med_r = jnp.sort(xfr)[(xfr.shape[0] - 1) // 2]
    exp_r = (x_r > med_r).astype(jnp.float32)
    assert bool(jnp.all(out_r == exp_r)), "mismatch vs reference (ragged)"

    print("KERNEL_OK")
</pallas_src>

<mosaic_0001>
module attributes {stable_mosaic.version = 11 : i64} {
  func.func @_radix_select_kernel(%arg0: i32, %arg1: i32, %arg2: memref<16x128xf32, #tpu.memory_space<vmem>>, %arg3: memref<1x1xi32, #tpu.memory_space<vmem>>, %arg4: memref<16x128xi32, #tpu.memory_space<vmem>>, %arg5: memref<1x1xi32, #tpu.memory_space<vmem>>, %arg6: memref<1x1xi32, #tpu.memory_space<vmem>>, %arg7: memref<1x1xi32, #tpu.memory_space<vmem>>) attributes {dimension_semantics = [#tpu.dimension_semantics<arbitrary>, #tpu.dimension_semantics<arbitrary>], iteration_bounds = array<i64: 32, 1>, scalar_prefetch = 0 : i64, scratch_operands = 4 : i64, tpu.core_type = #tpu.core_type<tc>, window_params = [{transform_indices = @transform_0, window_bounds = array<i64: 16, 128>}, {pipeline_mode = #tpu.pipeline_mode<synchronous>, transform_indices = @transform_1, window_bounds = array<i64: 1, 1>}]} {
    %c0_i32 = arith.constant 0 : i32
    %0 = arith.cmpi eq, %arg0, %c0_i32 : i32
    %c0_i32_0 = arith.constant 0 : i32
    %1 = arith.cmpi eq, %arg1, %c0_i32_0 : i32
    %2 = arith.andi %0, %1 : i1
    %3 = arith.extui %2 : i1 to i32
    %c0_i32_1 = arith.constant 0 : i32
    %4 = arith.cmpi ne, %3, %c0_i32_1 : i32
    scf.if %4 {
      %c-2147483648_i32 = arith.constant -2147483648 : i32
      %30 = vector.broadcast %c-2147483648_i32 : i32 to vector<1x1xi32>
      %c0_16 = arith.constant 0 : index
      %c0_17 = arith.constant 0 : index
      %31 = vector.load %arg5[%c0_16, %c0_17] : memref<1x1xi32, #tpu.memory_space<vmem>>, vector<1x1xi32>
      tpu.vector_store %arg5[%c0_16, %c0_17], %30 {strides = array<i32>} : memref<1x1xi32, #tpu.memory_space<vmem>>, vector<1x1xi32>,
      %c1023_i32 = arith.constant 1023 : i32
      %32 = vector.broadcast %c1023_i32 : i32 to vector<1x1xi32>
      %c0_18 = arith.constant 0 : index
      %c0_19 = arith.constant 0 : index
      %33 = vector.load %arg6[%c0_18, %c0_19] : memref<1x1xi32, #tpu.memory_space<vmem>>, vector<1x1xi32>
      tpu.vector_store %arg6[%c0_18, %c0_19], %32 {strides = array<i32>} : memref<1x1xi32, #tpu.memory_space<vmem>>, vector<1x1xi32>,
      %c2147483647_i32_20 = arith.constant 2147483647 : i32
      %34 = vector.broadcast %c2147483647_i32_20 : i32 to vector<1x1xi32>
      %c0_21 = arith.constant 0 : index
      %c0_22 = arith.constant 0 : index
      %35 = vector.load %arg7[%c0_21, %c0_22] : memref<1x1xi32, #tpu.memory_space<vmem>>, vector<1x1xi32>
      tpu.vector_store %arg7[%c0_21, %c0_22], %34 {strides = array<i32>} : memref<1x1xi32, #tpu.memory_space<vmem>>, vector<1x1xi32>,
    } else {
    }
    %c0_i32_2 = arith.constant 0 : i32
    %5 = arith.cmpi eq, %arg1, %c0_i32_2 : i32
    %6 = arith.extui %5 : i1 to i32
    %c0_i32_3 = arith.constant 0 : i32
    %7 = arith.cmpi ne, %6, %c0_i32_3 : i32
    scf.if %7 {
      %c0_i32_16 = arith.constant 0 : i32
      %30 = vector.broadcast %c0_i32_16 : i32 to vector<16x128xi32>
      %c0_17 = arith.constant 0 : index
      %c0_18 = arith.constant 0 : index
      %31 = vector.load %arg4[%c0_17, %c0_18] : memref<16x128xi32, #tpu.memory_space<vmem>>, vector<16x128xi32>
      tpu.vector_store %arg4[%c0_17, %c0_18], %30 {strides = array<i32>} : memref<16x128xi32, #tpu.memory_space<vmem>>, vector<16x128xi32>,
    } else {
    }
    %c0 = arith.constant 0 : index
    %c0_4 = arith.constant 0 : index
    %8 = vector.load %arg2[%c0, %c0_4] : memref<16x128xf32, #tpu.memory_space<vmem>>, vector<16x128xf32>
    %9 = tpu.bitcast %8 : vector<16x128xf32> -> vector<16x128xi32>
    %c0_i32_5 = arith.constant 0 : i32
    %10 = vector.broadcast %c0_i32_5 : i32 to vector<16x128xi32>
    %11 = arith.cmpi sge, %9, %10 : vector<16x128xi32>
    %c2147483647_i32 = arith.constant 2147483647 : i32
    %12 = vector.broadcast %c2147483647_i32 : i32 to vector<16x128xi32>
    %13 = arith.xori %9, %12 : vector<16x128xi32>
    %14 = arith.select %11, %9, %13 : vector<16x128xi1>, vector<16x128xi32>
    %c0_6 = arith.constant 0 : index
    %c0_7 = arith.constant 0 : index
    %15 = vector.load %arg5[%c0_6, %c0_7] : memref<1x1xi32, #tpu.memory_space<vmem>>, vector<1x1xi32>
    %c0_8 = arith.constant 0 : index
    %c0_9 = arith.constant 0 : index
    %16 = vector.load %arg7[%c0_8, %c0_9] : memref<1x1xi32, #tpu.memory_space<vmem>>, vector<1x1xi32>
    %17 = arith.addi %15, %16 : vector<1x1xi32>
    %18 = vector.broadcast %15 : vector<1x1xi32> to vector<16x128xi32>
    %19 = arith.cmpi sge, %14, %18 : vector<16x128xi32>
    %20 = vector.broadcast %17 : vector<1x1xi32> to vector<16x128xi32>
    %21 = arith.cmpi sle, %14, %20 : vector<16x128xi32>
    %22 = arith.andi %19, %21 : vector<16x128xi1>
    %c0_10 = arith.constant 0 : index
    %c0_11 = arith.constant 0 : index
    %23 = vector.load %arg4[%c0_10, %c0_11] : memref<16x128xi32, #tpu.memory_space<vmem>>, vector<16x128xi32>
    %24 = arith.extui %22 : vector<16x128xi1> to vector<16x128xi32>
    %25 = arith.addi %23, %24 : vector<16x128xi32>
    %c0_12 = arith.constant 0 : index
    %c0_13 = arith.constant 0 : index
    %26 = vector.load %arg4[%c0_12, %c0_13] : memref<16x128xi32, #tpu.memory_space<vmem>>, vector<16x128xi32>
    tpu.vector_store %arg4[%c0_12, %c0_13], %25 {strides = array<i32>} : memref<16x128xi32, #tpu.memory_space<vmem>>, vector<16x128xi32>,
    %c0_i32_14 = arith.constant 0 : i32
    %27 = arith.cmpi eq, %arg1, %c0_i32_14 : i32
    %28 = arith.extui %27 : i1 to i32
    %c0_i32_15 = arith.constant 0 : i32
    %29 = arith.cmpi ne, %28, %c0_i32_15 : i32
    scf.if %29 {
      %c0_16 = arith.constant 0 : index
      %c0_17 = arith.constant 0 : index
      %30 = vector.load %arg4[%c0_16, %c0_17] : memref<16x128xi32, #tpu.memory_space<vmem>>, vector<16x128xi32>
      %31 = vector.shape_cast %30 : vector<16x128xi32> to vector<1x16x128xi32>
      %cst = arith.constant dense<0> : vector<1xi32>
      %32 = vector.multi_reduction <add>, %31, %cst [1, 2] : vector<1x16x128xi32> to vector<1xi32>
      %33 = vector.shape_cast %32 : vector<1xi32> to vector<1x1x1xi32>
      %34 = vector.extract %33[0, 0, 0] : i32 from vector<1x1x1xi32>
      %35 = vector.broadcast %34 : i32 to vector<1x1xi32>
      %c0_18 = arith.constant 0 : index
      %c0_19 = arith.constant 0 : index
      %36 = vector.load %arg6[%c0_18, %c0_19] : memref<1x1xi32, #tpu.memory_space<vmem>>, vector<1x1xi32>
      %37 = arith.cmpi sge, %36, %35 : vector<1x1xi32>
      %c1_i32 = arith.constant 1 : i32
      %38 = vector.broadcast %c1_i32 : i32 to vector<1x1xi32>
      %39 = arith.addi %17, %38 : vector<1x1xi32>
      %40 = arith.select %37, %39, %15 : vector<1x1xi1>, vector<1x1xi32>
      %c0_20 = arith.constant 0 : index
      %c0_21 = arith.constant 0 : index
      %41 = vector.load %arg5[%c0_20, %c0_21] : memref<1x1xi32, #tpu.memory_space<vmem>>, vector<1x1xi32>
      tpu.vector_store %arg5[%c0_20, %c0_21], %40 {strides = array<i32>} : memref<1x1xi32, #tpu.memory_space<vmem>>, vector<1x1xi32>,
      %c0_22 = arith.constant 0 : index
      %c0_23 = arith.constant 0 : index
      %42 = vector.load %arg6[%c0_22, %c0_23] : memref<1x1xi32, #tpu.memory_space<vmem>>, vector<1x1xi32>
      %43 = arith.subi %42, %35 : vector<1x1xi32>
      %c0_24 = arith.constant 0 : index
      %c0_25 = arith.constant 0 : index
      %44 = vector.load %arg6[%c0_24, %c0_25] : memref<1x1xi32, #tpu.memory_space<vmem>>, vector<1x1xi32>
      %45 = arith.select %37, %43, %44 : vector<1x1xi1>, vector<1x1xi32>
      %c0_26 = arith.constant 0 : index
      %c0_27 = arith.constant 0 : index
      %46 = vector.load %arg6[%c0_26, %c0_27] : memref<1x1xi32, #tpu.memory_space<vmem>>, vector<1x1xi32>
      tpu.vector_store %arg6[%c0_26, %c0_27], %45 {strides = array<i32>} : memref<1x1xi32, #tpu.memory_space<vmem>>, vector<1x1xi32>,
      %c0_28 = arith.constant 0 : index
      %c0_29 = arith.constant 0 : index
      %47 = vector.load %arg7[%c0_28, %c0_29] : memref<1x1xi32, #tpu.memory_space<vmem>>, vector<1x1xi32>
      %c1_i32_30 = arith.constant 1 : i32
      %48 = vector.broadcast %c1_i32_30 : i32 to vector<1x1xi32>
      %49 = arith.shrsi %47, %48 : vector<1x1xi32>
      %c0_31 = arith.constant 0 : index
      %c0_32 = arith.constant 0 : index
      %50 = vector.load %arg7[%c0_31, %c0_32] : memref<1x1xi32, #tpu.memory_space<vmem>>, vector<1x1xi32>
      tpu.vector_store %arg7[%c0_31, %c0_32], %49 {strides = array<i32>} : memref<1x1xi32, #tpu.memory_space<vmem>>, vector<1x1xi32>,
      %c31_i32 = arith.constant 31 : i32
      %51 = arith.cmpi eq, %arg0, %c31_i32 : i32
      %52 = arith.extui %51 : i1 to i32
      %c0_i32_33 = arith.constant 0 : i32
      %53 = arith.cmpi ne, %52, %c0_i32_33 : i32
      scf.if %53 {
        %c0_34 = arith.constant 0 : index
        %c0_35 = arith.constant 0 : index
        %54 = vector.load %arg5[%c0_34, %c0_35] : memref<1x1xi32, #tpu.memory_space<vmem>>, vector<1x1xi32>
        %c0_36 = arith.constant 0 : index
        %c0_37 = arith.constant 0 : index
        %55 = vector.load %arg3[%c0_36, %c0_37] : memref<1x1xi32, #tpu.memory_space<vmem>>, vector<1x1xi32>
        tpu.vector_store %arg3[%c0_36, %c0_37], %54 {strides = array<i32>} : memref<1x1xi32, #tpu.memory_space<vmem>>, vector<1x1xi32>,
      } else {
      }
    } else {
    }
    return
  }
  func.func @transform_0(%arg0: i32, %arg1: i32) -> (i32, i32) {
    %c0_i32 = arith.constant 0 : i32
    %c0_i32_0 = arith.constant 0 : i32
    return %arg1, %c0_i32 : i32, i32
  }
  func.func @transform_1(%arg0: i32, %arg1: i32) -> (i32, i32) {
    %c0_i32 = arith.constant 0 : i32
    %c0_i32_0 = arith.constant 0 : i32
    %c0_i32_1 = arith.constant 0 : i32
    return %c0_i32, %c0_i32_0 : i32, i32
  }
}

</mosaic_0001>

<llo_original>
// kernel: tpu_custom_call.1
$region0: #{tpu_custom_call.1}
  #allocation0 [shape = 'u32[]', space=smem, size = 0x4, offset = 0x4, fixed_abs, tag = 'smem constant byte address 0x4 - core index']
  #allocation1 [shape = 'u32[72,128]{1,0:T(1,128)}', space=vmem, size = 0x9000, scoped, tag = 'internal scratch']
  #allocation2 [shape = 's32[16,128]{1,0:T(8,128)}', space=vmem, size = 0x2000, scoped, tag = 'scratch operand']
  #allocation3 [shape = 's32[1,1]{1,0:T(1,128)}', space=vmem, size = 0x200, scoped, tag = 'scratch operand']
  #allocation4 [shape = 's32[1,1]{1,0:T(1,128)}', space=vmem, size = 0x200, scoped, tag = 'scratch operand']
  #allocation5 [shape = 's32[1,1]{1,0:T(1,128)}', space=vmem, size = 0x200, scoped, tag = 'scratch operand']
  %s0 = inlined_call_operand.hbm [shape: f32[16,128], index: 0, kind: input, shape index: {}]
  %s1 = inlined_call_operand.hbm [shape: s32[1,1], index: 1, kind: output, shape index: {}]
  %s2 = sld [smem:[#allocation0]]
  $region57: #{tpu_custom_call.1} parent=0
    _
  %s4 = ssub.s32 1, %s2
  %s5 = scalar_select 0, %s4, %s2
  $region1: #{tpu_custom_call.1} parent=0
    #allocation6 [shape = 'u8[8192]{0}', space=vmem, size = 0x2000, scoped, tag = 'input window, operand 0, single buffered']
    #allocation7 [shape = 's32[2]{0}', space=sflag, size = 0x8, scoped, tag = 'scoped memory for tpu_custom_call.1']
    #allocation8 [shape = 's32[2]{0}', space=sflag, size = 0x8, scoped, tag = 'scoped memory for tpu_custom_call.1']
    #allocation9 [shape = 'u8[512]{0}', space=vmem, size = 0x400, scoped, tag = 'output window, operand 0, single buffered']
    %6 = vsyncpa [#allocation7], 0
    %7 = vsyncpa [#allocation8], 0
    loop: start=0, step=1, limit=34
    $region2: #{tpu_custom_call.1} parent=1 // loop_pre_header
      _
    $region3: #{tpu_custom_call.1} parent=1 // loop_header
      %s9 = sphi 0, %s13
      %p10 = scmp.ge.s32.totalorder %s9, 34
      %s16 = sphi 0, %s28
      %s17 = sphi 0, %s24
      %s18 = sphi 0, %s16
      %s19 = sphi 0, %s17
      %s20 = sphi 0, %s18
      %s21 = sphi 0, %s19
      %s31 = sphi 0, %s33
      %s34 = sphi 0, %s31
      %s35 = sphi 0, %s34
      %s51 = sphi 0, %s35
      %s55 = sphi 0, %s55
      %s57 = sphi 0, %s55
      %s58 = sphi 0, %s57
      %s72 = sphi 0, %s58
    $region4: #{tpu_custom_call.1} parent=1 // loop_header_branch
      %12 = sbr.rel (%p10) target = $region8
    $region5: #{tpu_custom_call.1} parent=1 // loop_body
      %s14 = ssub.s32 %s9, 1
      %s15 = ssub.s32 %s9, 2
      %s22 = sadd.s32 1, %s17
      %p23 = scmp.ge.s32.totalorder %s22, 1
      %s24 = scalar_select %p23, 0, %s22
      %s25 = sadd.s32 1, %s16
      %s26 = scalar_select %p23, %s25, %s16
      %p27 = scmp.ge.s32.totalorder %s26, 32
      %s28 = scalar_select %p27, 0, %s26
      %s29 = ssub.s32 %s17, %s24
      %p30 = scmp.eq.s32.totalorder %s29, 0
      %s32 = sadd.s32 %s31, 1
      %s33 = scalar_select %p30, %s31, %s32
      %p36 = pneg %p30
      %p37 = scmp.eq.s32.totalorder %s9, 31
      %p38 = por %p36, %p37
      %p39 = scmp.ne.s32.totalorder %s31, %s34
      %p40 = scmp.eq.s32.totalorder %s9, 0
      %p41 = por %p39, %p40
      %p42 = scmp.ne.s32.totalorder %s31, %s34
      %p43 = scmp.eq.s32.totalorder %s14, 31
      %p44 = por %p42, %p43
      %p45 = scmp.ne.s32.totalorder %s34, %s35
      %p46 = scmp.eq.s32.totalorder %s14, 0
      %p47 = por %p45, %p46
      %p48 = scmp.ne.s32.totalorder %s34, %s35
      %p49 = scmp.eq.s32.totalorder %s15, 31
      %p50 = por %p48, %p49
      %p52 = scmp.ne.s32.totalorder %s35, %s51
      %p53 = scmp.eq.s32.totalorder %s15, 0
      %p54 = por %p52, %p53
      %s56 = sadd.s32 %s55, 1
      %p59 = scmp.eq.s32.totalorder %s9, 31
      %p60 = scmp.ne.s32.totalorder %s55, %s57
      %p61 = scmp.eq.s32.totalorder %s9, 0
      %p62 = por %p60, %p61
      %p63 = scmp.ne.s32.totalorder %s55, %s57
      %p64 = scmp.eq.s32.totalorder %s14, 31
      %p65 = por %p63, %p64
      %p66 = scmp.ne.s32.totalorder %s57, %s58
      %p67 = scmp.eq.s32.totalorder %s14, 0
      %p68 = por %p66, %p67
      %p69 = scmp.ne.s32.totalorder %s57, %s58
      %p70 = scmp.eq.s32.totalorder %s15, 31
      %p71 = por %p69, %p70
      %p73 = scmp.ne.s32.totalorder %s58, %s72
      %p74 = scmp.eq.s32.totalorder %s15, 0
      %p75 = por %p73, %p74
      %p76 = scmp.le.s32.totalorder 1, %s9
      %p77 = scmp.lt.s32.totalorder %s9, 33
      %p78 = pnand %p76, %p77
      %p79 = pneg %p78
      // Predicated region
      $region9: #{tpu_custom_call.1} parent=5 // pred_check
        _
      $region10: #{tpu_custom_call.1} parent=5 // pred_check_branch
        %81 = sbr.rel (%p78) target = $region12
      $region11: #{tpu_custom_call.1} parent=5 // pred_region
        %s82 = ssub.s32 %s9, 1
        // Predicated region
        $region13: #{tpu_custom_call.1} parent=11 // pred_check
          %p83 = pneg %p47
        $region14: #{tpu_custom_call.1} parent=11 // pred_check_branch
          %85 = sbr.rel (%p83) target = $region16
        $region15: #{tpu_custom_call.1} parent=11 // pred_region
          %s86 = smul.u32 2, %s19
          %88 = vsyncadd [#allocation7], 0
          %s89 = smul.addr %s86, 8
          %s90 = scalar_lea.hbm %s0, %s89
          %s91 = sshll.u32 %s90, 4
          %s92 = int_to_ptr.hbm [resolvable:$true] %s91
          %s93 = sshll.u32 [#allocation6], 4
          %s94 = int_to_ptr.vmem [resolvable:$true] %s93
          %99 = dma.hbm_to_vmem [thread:$0]  %s92, 256, %s94, [#allocation7], 128, 128, 8
        $region16: #{tpu_custom_call.1} parent=11 // pred_fallthru
          _
      $region12: #{tpu_custom_call.1} parent=5 // pred_fallthru
        _
      %p100 = scmp.lt.s32.totalorder %s9, 32
      // Predicated region
      $region17: #{tpu_custom_call.1} parent=5 // pred_check
        %p101 = pneg %p100
      $region18: #{tpu_custom_call.1} parent=5 // pred_check_branch
        %103 = sbr.rel (%p101) target = $region20
      $region19: #{tpu_custom_call.1} parent=5 // pred_region
        _
      $region20: #{tpu_custom_call.1} parent=5 // pred_fallthru
        _
      %p104 = scmp.le.s32.totalorder 1, %s9
      %p105 = scmp.lt.s32.totalorder %s9, 33
      %p106 = pnand %p104, %p105
      %p107 = pneg %p106
      // Predicated region
      $region21: #{tpu_custom_call.1} parent=5 // pred_check
        _
      $region22: #{tpu_custom_call.1} parent=5 // pred_check_branch
        %109 = sbr.rel (%p106) target = $region24
      $region23: #{tpu_custom_call.1} parent=5 // pred_region
        %s110 = ssub.s32 %s9, 1
        // Predicated region
        $region25: #{tpu_custom_call.1} parent=23 // pred_check
          %p111 = pneg %p47
        $region26: #{tpu_custom_call.1} parent=23 // pred_check_branch
          %113 = sbr.rel (%p111) target = $region28
        $region27: #{tpu_custom_call.1} parent=23 // pred_region
          %115 = dma.done [#allocation7], 256
        $region28: #{tpu_custom_call.1} parent=23 // pred_fallthru
          _
        %p116 = pneg %p47
        %p117 = pneg %p44
        %p118 = pneg %p68
        %p119 = pneg %p65
        %s120 = smul.u32 2, %s19
        %p121 = scmp.eq.s32.totalorder %s18, 0
        %p122 = scmp.eq.s32.totalorder %s19, 0
        %p123 = pnand %p121, %p122
        %p124 = pneg %p123
        // Predicated region
        $region29: #{tpu_custom_call.1} parent=23 // pred_check
          _
        $region30: #{tpu_custom_call.1} parent=23 // pred_check_branch
          %126 = sbr.rel (%p123) target = $region32
        $region31: #{tpu_custom_call.1} parent=23 // pred_region
          %vm127 = vcmask 0
          %128 = vst.msk [vmem:[#allocation3] sm:$0x1] %vm127, 2147483648
          %129 = vst.msk [vmem:[#allocation4] sm:$0x1] %vm127, 1023
          %130 = vst.msk [vmem:[#allocation5] sm:$0x1] %vm127, 2147483647
        $region32: #{tpu_custom_call.1} parent=23 // pred_fallthru
          _
        // Predicated region
        $region33: #{tpu_custom_call.1} parent=23 // pred_check
          %p131 = pneg %p122
        $region34: #{tpu_custom_call.1} parent=23 // pred_check_branch
          %133 = sbr.rel (%p131) target = $region36
        $region35: #{tpu_custom_call.1} parent=23 // pred_region
          %134 = vst [vmem:[#allocation2] sm:$0xff] 0
          %135 = vst [vmem:[#allocation2 + $0x8] sm:$0xff] 0
        $region36: #{tpu_custom_call.1} parent=23 // pred_fallthru
          _
        %v136 = vld [vmem:[#allocation6] sm:$0xff]
        %v137 = vld [vmem:[#allocation6 + $0x8] sm:$0xff]
        %vm140 = vcmp.ge.s32.totalorder %v136, 0
        %vm141 = vcmp.ge.s32.totalorder %v137, 0
        %v142 = vxor.u32 %v136, 2147483647
        %v143 = vxor.u32 %v137, 2147483647
        %v144 = vsel %vm140, %v136, %v142
        %v145 = vsel %vm141, %v137, %v143
        %v146 = vld [vmem:[#allocation3] sm:$0x1]
        %v147 = vld [vmem:[#allocation5] sm:$0x1]
        %v148 = vadd.s32 %v146, %v147
        %v149 = vperm.slane %v146, 0
        %150 = vset.pattern.permute.xlu0 0
        %151 = vperm.xlu0 %150, %v149
        %v152 = vpop.permute.xlu0 %151
        %vm153 = vcmp.ge.s32.totalorder %v144, %v152
        %vm154 = vcmp.ge.s32.totalorder %v145, %v152
        %v155 = vperm.slane %v148, 0
        %156 = vset.pattern.permute.xlu0 0
        %157 = vperm.xlu0 %156, %v155
        %v158 = vpop.permute.xlu0 %157
        %vm159 = vcmp.le.s32.totalorder %v144, %v158
        %vm160 = vcmp.le.s32.totalorder %v145, %v158
        %vm161 = vmand %vm153, %vm159
        %vm162 = vmand %vm154, %vm160
        %v163 = vld [vmem:[#allocation2] sm:$0xff]
        %v164 = vld [vmem:[#allocation2 + $0x8] sm:$0xff]
        %v165 = vsel %vm161, 1, 0
        %v166 = vsel %vm162, 1, 0
        %v167 = vadd.s32 %v163, %v165
        %v168 = vadd.s32 %v164, %v166
        %169 = vst [vmem:[#allocation2] sm:$0xff] %v167
        %170 = vst [vmem:[#allocation2 + $0x8] sm:$0xff] %v168
        // Predicated region
        $region37: #{tpu_custom_call.1} parent=23 // pred_check
          %p171 = pneg %p122
        $region38: #{tpu_custom_call.1} parent=23 // pred_check_branch
          %173 = sbr.rel (%p171) target = $region40
        $region39: #{tpu_custom_call.1} parent=23 // pred_region
          %v174 = vld [vmem:[#allocation2] sm:$0xff]
          %v175 = vld [vmem:[#allocation2 + $0x8] sm:$0xff]
          %v176 = vadd.s32 %v174, %v175
          %v177 = vand.u32 %v176, 65535
          %v178 = vshrl.u32 %v176, 16
          %v179 = vcvt.s32.f32 %v177
          %v180 = vcvt.s32.f32 %v178
          %181 = vadd.xlane.f32.xlu0 %v179
          %v182 = vpop.xlane.xlu0 %181
          %183 = vadd.xlane.f32.xlu0 %v180
          %v184 = vpop.xlane.xlu0 %183
          %v185 = vcvt.f32.s32 %v182
          %v186 = vcvt.f32.s32 %v184
          %v187 = vshll.u32 %v186, 16
          %v188 = vadd.s32 %v187, %v185
          %v189 = vrot.slane %v188, 4
          %v190 = vadd.s32 %v188, %v189
          %v191 = vrot.slane %v190, 2
          %v192 = vadd.s32 %v190, %v191
          %v193 = vrot.slane %v192, 1
          %v194 = vadd.s32 %v192, %v193
          %s195 = vtos %v194
          %v196 = vstv %s195
          %v197 = vld [vmem:[#allocation4] sm:$0x1]
          %vm198 = vcmp.ge.s32.totalorder %v197, %v196
          %v199 = vadd.s32 %v148, 1
          %v200 = vsel %vm198, %v199, %v146
          %vm201 = vcmask 0
          %202 = vst.msk [vmem:[#allocation3] sm:$0x1] %vm201, %v200
          %v203 = vld [vmem:[#allocation4] sm:$0x1]
          %v204 = vsub.s32 %v203, %v196
          %v205 = vsel %vm198, %v204, %v203
          %206 = vst.msk [vmem:[#allocation4] sm:$0x1] %vm201, %v205
          %v207 = vld [vmem:[#allocation5] sm:$0x1]
          %v208 = vshra.s32 %v207, 1
          %209 = vst.msk [vmem:[#allocation5] sm:$0x1] %vm201, %v208
          %p210 = scmp.eq.s32.totalorder %s18, 31
          // Predicated region
          $region41: #{tpu_custom_call.1} parent=39 // pred_check
            %p211 = pneg %p210
          $region42: #{tpu_custom_call.1} parent=39 // pred_check_branch
            %213 = sbr.rel (%p211) target = $region44
          $region43: #{tpu_custom_call.1} parent=39 // pred_region
            %v214 = vld [vmem:[#allocation3] sm:$0x1]
            %215 = vst.msk [vmem:[#allocation9] sm:$0x1] %vm201, %v214
          $region44: #{tpu_custom_call.1} parent=39 // pred_fallthru
            _
        $region40: #{tpu_custom_call.1} parent=23 // pred_fallthru
          _
        // Predicated region
        $region45: #{tpu_custom_call.1} parent=23 // pred_check
          %p216 = pneg %p65
        $region46: #{tpu_custom_call.1} parent=23 // pred_check_branch
          %218 = sbr.rel (%p216) target = $region48
        $region47: #{tpu_custom_call.1} parent=23 // pred_region
          %220 = vsyncadd [#allocation8], 0
          %s222 = sshll.u32 [#allocation9], 4
          %s223 = int_to_ptr.vmem [resolvable:$true] %s222
          %s224 = sshll.u32 %s1, 4
          %s225 = int_to_ptr.hbm [resolvable:$true] %s224
          %227 = dma.vmem_to_hbm [thread:$0]  %s223, 16, %s225, [#allocation8]
        $region48: #{tpu_custom_call.1} parent=23 // pred_fallthru
          _
        // Predicated region
        $region49: #{tpu_custom_call.1} parent=23 // pred_check
          %p228 = pneg %p65
        $region50: #{tpu_custom_call.1} parent=23 // pred_check_branch
          %230 = sbr.rel (%p228) target = $region52
        $region51: #{tpu_custom_call.1} parent=23 // pred_region
          %232 = dma.done [#allocation8], 16
        $region52: #{tpu_custom_call.1} parent=23 // pred_fallthru
          _
      $region24: #{tpu_custom_call.1} parent=5 // pred_fallthru
        _
      %p233 = scmp.le.s32.totalorder 2, %s9
      // Predicated region
      $region53: #{tpu_custom_call.1} parent=5 // pred_check
        %p234 = pneg %p233
      $region54: #{tpu_custom_call.1} parent=5 // pred_check_branch
        %236 = sbr.rel (%p234) target = $region56
      $region55: #{tpu_custom_call.1} parent=5 // pred_region
        %s237 = ssub.s32 %s9, 2
      $region56: #{tpu_custom_call.1} parent=5 // pred_fallthru
        _
    $region6: #{tpu_custom_call.1} parent=1 // loop_footer
      %s13 = sadd.s32 1, %s9
    $region7: #{tpu_custom_call.1} parent=1 // loop_footer_branch
      %8 = sbr.rel target = $region3
    $region8: #{tpu_custom_call.1} parent=1 // loop_exit
      _
    %238 = vsyncpa [#allocation7], 1
    %s239 = scalar_lea.sflag [#allocation7], 1
    %240 = vsyncpa %s239, 1
    %241 = vsyncpa [#allocation8], 1
    %s242 = scalar_lea.sflag [#allocation8], 1
    %243 = vsyncpa %s242, 1

</llo_original>
